<compile_context>
chip_gen: v5e
topology: v5e:2x2
jax: 0.10.0
libtpu: 0.0.40
codegen_flags: <defaults>
</compile_context>

<pallas_src>
import functools
import math

import jax
import jax.numpy as jnp
from jax import lax
from jax.experimental import pallas as pl
from jax.experimental.pallas import tpu as pltpu


# ---------------------------------------------------------------------------
# Kernel 1: fused Q/K/V projection -> lane-dense (B, S, A) outputs
# ---------------------------------------------------------------------------
def _qkv_proj_kernel(x_ref, wq_ref, bq_ref, wk_ref, bk_ref, wv_ref, bv_ref,
                     q_ref, k_ref, v_ref, *, q_scale):
    x = x_ref[0]                                            # (TS, H)

    def proj(w_ref, b_ref):
        y = jnp.dot(x, w_ref[...], preferred_element_type=jnp.float32)
        return y + b_ref[...]                               # bias kept in f32

    q_ref[0] = (proj(wq_ref, bq_ref) * q_scale).astype(q_ref.dtype)  # fold 1/sqrt(Dh)
    k_ref[0] = proj(wk_ref, bk_ref).astype(k_ref.dtype)
    v_ref[0] = proj(wv_ref, bv_ref).astype(v_ref.dtype)


# ---------------------------------------------------------------------------
# Kernel 2: flash attention (online softmax, heads in-kernel) + out projection
# ---------------------------------------------------------------------------
def _flash_attn_kernel(*refs, mask_mode, num_heads, head_size):
    if mask_mode == "none":
        (q_ref, k_ref, v_ref, wo_ref, bo_ref, out_ref,
         m_scr, l_scr, acc_scr) = refs
        mask_ref = None
    else:
        (q_ref, k_ref, v_ref, mask_ref, wo_ref, bo_ref, out_ref,
         m_scr, l_scr, acc_scr) = refs

    ki = pl.program_id(2)
    nk = pl.num_programs(2)
    dh = head_size

    @pl.when(ki == 0)
    def _():                                                # new (b, q-tile): reset state
        # finite init (not -inf) so fully-masked key tiles never produce NaN
        m_scr[...] = jnp.full_like(m_scr, -1e30)
        l_scr[...] = jnp.zeros_like(l_scr)
        acc_scr[...] = jnp.zeros_like(acc_scr)

    q_all = q_ref[0]                                        # (TQ, A), pre-scaled
    k_all = k_ref[0]                                        # (TK, A)
    v_all = v_ref[0]                                        # (TK, A)

    if mask_mode == "full":
        mask_tile = mask_ref[0].astype(jnp.float32)         # (TQ, TK) read once, reused by all heads
    elif mask_mode == "row":
        mask_tile = mask_ref[0].astype(jnp.float32)         # (1, TK) padding row, broadcasts over TQ
    else:
        mask_tile = None

    for h in range(num_heads):                              # static unrolled head loop
        sl = slice(h * dh, (h + 1) * dh)
        q_h = q_all[:, sl]
        k_h = k_all[:, sl]
        v_h = v_all[:, sl]

        # contract over head dim (no in-kernel transpose)
        s = lax.dot_general(q_h, k_h, (((1,), (1,)), ((), ())),
                            preferred_element_type=jnp.float32)      # (TQ, TK) f32
        if mask_tile is not None:
            s = s + mask_tile

        m_prev = m_scr[h]                                   # (TQ, 1)
        m_new = jnp.maximum(m_prev, jnp.max(s, axis=-1, keepdims=True))
        alpha = jnp.exp(m_prev - m_new)
        p = jnp.exp(s - m_new)                              # f32 softmax numerator
        l_scr[h] = alpha * l_scr[h] + jnp.sum(p, axis=-1, keepdims=True)
        acc_scr[h] = alpha * acc_scr[h] + jnp.dot(
            p.astype(v_h.dtype), v_h, preferred_element_type=jnp.float32)
        m_scr[h] = m_new

    @pl.when(ki == nk - 1)
    def _():                                                # all key tiles seen: project & emit
        tq = q_ref.shape[1]
        hidden = wo_ref.shape[1]
        # initialize the output accumulator with bo (no separate bias add)
        out = jnp.broadcast_to(bo_ref[...].astype(jnp.float32), (tq, hidden))
        for h in range(num_heads):
            ctx = acc_scr[h] * pl.reciprocal(l_scr[h], approx=False)  # (TQ, Dh) f32
            wo_h = wo_ref[h * dh:(h + 1) * dh, :]                     # (Dh, H) resident slice
            out = out + jnp.dot(ctx.astype(wo_h.dtype), wo_h,
                                preferred_element_type=jnp.float32)
        out_ref[0] = out.astype(out_ref.dtype)


# ---------------------------------------------------------------------------
# Wrapper helpers
# ---------------------------------------------------------------------------
def _choose_tile(s, target):
    """Largest multiple of 128 <= target that divides s; else the full length."""
    if s <= target:
        return s
    t = (min(target, s) // 128) * 128
    while t >= 128:
        if s % t == 0:
            return t
        t -= 128
    return s


def pack_base_attention_params(params, *, num_heads, head_size,
                               compute_dtype=jnp.float32):
    """Repack nn.Linear weights into kernel layouts.  Call ONCE outside the hot
    path so the relayout/cast traffic is not paid on every forward."""
    A = num_heads * head_size
    H = params["wq"].shape[1]
    assert params["wq"].shape == (A, H)
    f32 = jnp.float32
    return dict(
        wq_t=jnp.asarray(params["wq"]).T.astype(compute_dtype),   # (H, A)
        wk_t=jnp.asarray(params["wk"]).T.astype(compute_dtype),
        wv_t=jnp.asarray(params["wv"]).T.astype(compute_dtype),
        wo_t=jnp.asarray(params["wo"]).T.astype(compute_dtype),   # (A, H)
        bq=jnp.asarray(params["bq"]).reshape(1, A).astype(f32),
        bk=jnp.asarray(params["bk"]).reshape(1, A).astype(f32),
        bv=jnp.asarray(params["bv"]).reshape(1, A).astype(f32),
        bo=jnp.asarray(params["bo"]).reshape(1, H).astype(f32),
    )


def _normalize_mask(attention_mask, B, S, compute_dtype):
    """Classify the additive mask.  Returns (mode, array):
      None                              -> ("none", None)      no mask traffic at all
      (B,S) / (B,1,S) / (B,1,1,S)       -> ("row",  (b,1,S))    key-padding row, O(S) traffic
      (B,S,S) / (B,1,S,S)               -> ("full", (b,S,S))    general additive mask
    A leading batch dim of 1 is kept (broadcast via index_map)."""
    if attention_mask is None:
        return "none", None
    m = jnp.asarray(attention_mask)
    if m.ndim == 4:
        assert m.shape[1] == 1, "per-head attention masks are not supported"
        if m.shape[2] == 1:
            m = m.reshape(m.shape[0], 1, m.shape[3])
            mode = "row"
        else:
            m = m.reshape(m.shape[0], m.shape[2], m.shape[3])
            mode = "full"
    elif m.ndim == 3:
        mode = "row" if m.shape[1] == 1 else "full"
    elif m.ndim == 2:
        m = m.reshape(m.shape[0], 1, m.shape[1])
        mode = "row"
    else:
        raise ValueError(f"unsupported attention_mask rank: {m.ndim}")
    assert m.shape[-1] == S and m.shape[0] in (1, B)
    if mode == "full":
        assert m.shape[1] == S
    return mode, m.astype(compute_dtype)


# ---------------------------------------------------------------------------
# Forward
# ---------------------------------------------------------------------------
def base_attention_forward(hidden_states, attention_mask, packed, *,
                           num_heads, head_size,
                           seq_tile=512, q_tile=256, kv_tile=512):
    """hidden_states: (B, S, H); attention_mask: additive (see _normalize_mask)
    or None; packed: output of pack_base_attention_params.
    Returns (output (B, S, H), stats dict) like BaseAttention.forward."""
    B, S, H = hidden_states.shape
    NH, Dh = num_heads, head_size
    A = NH * Dh
    compute_dtype = packed["wq_t"].dtype            # pass bf16-packed params for bf16 MXU ops
    out_dtype = hidden_states.dtype

    x = hidden_states.astype(compute_dtype)
    TS = _choose_tile(S, seq_tile)
    TQ = _choose_tile(S, q_tile)                    # keep TQ modest for v7x's 64 MiB VMEM
    TK = _choose_tile(S, kv_tile)

    # ---- Kernel 1: Q/K/V projection into lane-dense (B, S, A) --------------
    qkv_shape = jax.ShapeDtypeStruct((B, S, A), compute_dtype)
    w_spec = pl.BlockSpec((H, A), lambda b, si: (0, 0))       # VMEM-resident weights
    b_spec = pl.BlockSpec((1, A), lambda b, si: (0, 0))
    qkv_out_spec = pl.BlockSpec((1, TS, A), lambda b, si: (b, si, 0))

    q, k, v = pl.pallas_call(
        functools.partial(_qkv_proj_kernel, q_scale=1.0 / math.sqrt(Dh)),
        out_shape=(qkv_shape, qkv_shape, qkv_shape),
        grid=(B, S // TS),
        in_specs=[
            pl.BlockSpec((1, TS, H), lambda b, si: (b, si, 0)),   # x tile
            w_spec, b_spec,                                       # Wq^T, bq
            w_spec, b_spec,                                       # Wk^T, bk
            w_spec, b_spec,                                       # Wv^T, bv
        ],
        out_specs=(qkv_out_spec, qkv_out_spec, qkv_out_spec),
        compiler_params=pltpu.CompilerParams(
            dimension_semantics=("parallel", "parallel")),
    )(x, packed["wq_t"], packed["bq"], packed["wk_t"], packed["bk"],
      packed["wv_t"], packed["bv"])

    # ---- Kernel 2: flash attention (heads in-kernel) + output projection ---
    mask_mode, mask = _normalize_mask(attention_mask, B, S, compute_dtype)

    in_specs = [
        pl.BlockSpec((1, TQ, A), lambda b, qi, ki: (b, qi, 0)),   # q (const over ki)
        pl.BlockSpec((1, TK, A), lambda b, qi, ki: (b, ki, 0)),   # k
        pl.BlockSpec((1, TK, A), lambda b, qi, ki: (b, ki, 0)),   # v
    ]
    operands = [q, k, v]
    if mask_mode != "none":
        bcast_b = mask.shape[0] == 1
        if mask_mode == "row":
            mspec = pl.BlockSpec(
                (1, 1, TK),
                (lambda b, qi, ki: (0, 0, ki)) if bcast_b
                else (lambda b, qi, ki: (b, 0, ki)))
        else:
            mspec = pl.BlockSpec(
                (1, TQ, TK),
                (lambda b, qi, ki: (0, qi, ki)) if bcast_b
                else (lambda b, qi, ki: (b, qi, ki)))
        in_specs.append(mspec)
        operands.append(mask)
    in_specs += [
        pl.BlockSpec((A, H), lambda b, qi, ki: (0, 0)),           # Wo^T resident
        pl.BlockSpec((1, H), lambda b, qi, ki: (0, 0)),           # bo resident
    ]
    operands += [packed["wo_t"], packed["bo"]]

    out = pl.pallas_call(
        functools.partial(_flash_attn_kernel, mask_mode=mask_mode,
                          num_heads=NH, head_size=Dh),
        out_shape=jax.ShapeDtypeStruct((B, S, H), out_dtype),
        grid=(B, S // TQ, S // TK),
        in_specs=in_specs,
        out_specs=pl.BlockSpec((1, TQ, H), lambda b, qi, ki: (b, qi, 0)),
        scratch_shapes=[
            pltpu.VMEM((NH, TQ, 1), jnp.float32),    # running max m (per head)
            pltpu.VMEM((NH, TQ, 1), jnp.float32),    # running denom l (per head)
            pltpu.VMEM((NH, TQ, Dh), jnp.float32),   # per-head context accumulators
        ],
        compiler_params=pltpu.CompilerParams(
            dimension_semantics=("parallel", "parallel", "arbitrary")),
    )(*operands)

    stats = {}  # monitor / cache / logging infra of the module is a no-op here
    return out, stats


# ---------------------------------------------------------------------------
# Pure-JAX reference for correctness check
# ---------------------------------------------------------------------------
def reference_forward(hidden_states, attention_mask, params, *, num_heads, head_size):
    B, S, H = hidden_states.shape
    A = num_heads * head_size

    def linear(t, w, b):
        return t @ w.T + b

    q = linear(hidden_states, params["wq"], params["bq"])
    k = linear(hidden_states, params["wk"], params["bk"])
    v = linear(hidden_states, params["wv"], params["bv"])

    def split(t):
        return t.reshape(B, S, num_heads, head_size).transpose(0, 2, 1, 3)

    q, k, v = split(q), split(k), split(v)
    scores = jnp.einsum("bhqd,bhkd->bhqk", q, k) / math.sqrt(head_size)
    if attention_mask is not None:
        scores = scores + attention_mask
    probs = jax.nn.softmax(scores, axis=-1)
    ctx = jnp.einsum("bhqk,bhkd->bhqd", probs, v)
    ctx = ctx.transpose(0, 2, 1, 3).reshape(B, S, A)
    return linear(ctx, params["wo"], params["bo"])


if __name__ == "__main__":
    # Small config consistent with the module: hidden=32, 4 heads x head_size 8.
    B, S, H = 2, 8, 32
    num_heads, head_size = 4, 8
    all_head = num_heads * head_size

    key = jax.random.PRNGKey(0)
    ks = jax.random.split(key, 10)

    scale = 1.0 / math.sqrt(H)
    params = {
        "wq": jax.random.uniform(ks[0], (all_head, H), jnp.float32, -scale, scale),
        "bq": jax.random.uniform(ks[1], (all_head,), jnp.float32, -scale, scale),
        "wk": jax.random.uniform(ks[2], (all_head, H), jnp.float32, -scale, scale),
        "bk": jax.random.uniform(ks[3], (all_head,), jnp.float32, -scale, scale),
        "wv": jax.random.uniform(ks[4], (all_head, H), jnp.float32, -scale, scale),
        "bv": jax.random.uniform(ks[5], (all_head,), jnp.float32, -scale, scale),
        "wo": jax.random.uniform(ks[6], (H, all_head), jnp.float32, -scale, scale),
        "bo": jax.random.uniform(ks[7], (H,), jnp.float32, -scale, scale),
    }
    hidden_states = jax.random.normal(ks[8], (B, S, H), jnp.float32)

    # Pack weights ONCE outside the hot path.
    packed = pack_base_attention_params(params, num_heads=num_heads,
                                        head_size=head_size,
                                        compute_dtype=jnp.float32)

    # 1) general additive mask (B, 1, S, S): mask last 2 keys of batch 1
    full_mask = jnp.zeros((B, 1, S, S), jnp.float32).at[1, 0, :, -2:].set(-1e9)
    # 2) equivalent key-padding mask (B, 1, 1, S) exercising the "row" path
    row_mask = jnp.zeros((B, 1, 1, S), jnp.float32).at[1, 0, 0, -2:].set(-1e9)

    for name, mask in [("full", full_mask), ("row", row_mask), ("none", None)]:
        out, stats = base_attention_forward(hidden_states, mask, packed,
                                            num_heads=num_heads,
                                            head_size=head_size)
        out = jax.block_until_ready(out)
        ref = reference_forward(hidden_states, mask, params,
                                num_heads=num_heads, head_size=head_size)
        assert out.shape == (B, S, H)
        err = jnp.max(jnp.abs(out - ref))
        assert jnp.allclose(out, ref, atol=2e-3, rtol=2e-3), \
            f"mask={name}: max err {err}"

    print("KERNEL_OK")
</pallas_src>

<mosaic_0001>
module attributes {stable_mosaic.version = 11 : i64} {
  func.func @_qkv_proj_kernel(%arg0: i32, %arg1: i32, %arg2: memref<1x8x32xf32, #tpu.memory_space<vmem>>, %arg3: memref<32x32xf32, #tpu.memory_space<vmem>>, %arg4: memref<1x32xf32, #tpu.memory_space<vmem>>, %arg5: memref<32x32xf32, #tpu.memory_space<vmem>>, %arg6: memref<1x32xf32, #tpu.memory_space<vmem>>, %arg7: memref<32x32xf32, #tpu.memory_space<vmem>>, %arg8: memref<1x32xf32, #tpu.memory_space<vmem>>, %arg9: memref<1x8x32xf32, #tpu.memory_space<vmem>>, %arg10: memref<1x8x32xf32, #tpu.memory_space<vmem>>, %arg11: memref<1x8x32xf32, #tpu.memory_space<vmem>>) attributes {dimension_semantics = [#tpu.dimension_semantics<parallel>, #tpu.dimension_semantics<parallel>], iteration_bounds = array<i64: 2, 1>, scalar_prefetch = 0 : i64, scratch_operands = 0 : i64, tpu.core_type = #tpu.core_type<tc>, window_params = [{transform_indices = @transform_0, window_bounds = array<i64: 1, 8, 32>}, {pipeline_mode = #tpu.pipeline_mode<synchronous>, transform_indices = @transform_1, window_bounds = array<i64: 32, 32>}, {pipeline_mode = #tpu.pipeline_mode<synchronous>, transform_indices = @transform_2, window_bounds = array<i64: 1, 32>}, {pipeline_mode = #tpu.pipeline_mode<synchronous>, transform_indices = @transform_3, window_bounds = array<i64: 32, 32>}, {pipeline_mode = #tpu.pipeline_mode<synchronous>, transform_indices = @transform_4, window_bounds = array<i64: 1, 32>}, {pipeline_mode = #tpu.pipeline_mode<synchronous>, transform_indices = @transform_5, window_bounds = array<i64: 32, 32>}, {pipeline_mode = #tpu.pipeline_mode<synchronous>, transform_indices = @transform_6, window_bounds = array<i64: 1, 32>}, {transform_indices = @transform_7, window_bounds = array<i64: 1, 8, 32>}, {transform_indices = @transform_8, window_bounds = array<i64: 1, 8, 32>}, {transform_indices = @transform_9, window_bounds = array<i64: 1, 8, 32>}]} {
    %c0 = arith.constant 0 : index
    %c0_0 = arith.constant 0 : index
    %c0_1 = arith.constant 0 : index
    %0 = vector.load %arg2[%c0, %c0_0, %c0_1] : memref<1x8x32xf32, #tpu.memory_space<vmem>>, vector<1x8x32xf32>
    %1 = vector.shape_cast %0 : vector<1x8x32xf32> to vector<8x32xf32>
    %c0_2 = arith.constant 0 : index
    %c0_3 = arith.constant 0 : index
    %2 = vector.load %arg3[%c0_2, %c0_3] : memref<32x32xf32, #tpu.memory_space<vmem>>, vector<32x32xf32>
    %cst = arith.constant dense<0.000000e+00> : vector<8x32xf32>
    %3 = tpu.matmul %1, %2, %cst {dimension_numbers = #tpu.dot_dimension_numbers<[1], [0], [0], [1], [0, 0, 1, 1], [], []>} : vector<8x32xf32>, vector<32x32xf32>, vector<8x32xf32> -> vector<8x32xf32>
    %c0_4 = arith.constant 0 : index
    %c0_5 = arith.constant 0 : index
    %4 = vector.load %arg4[%c0_4, %c0_5] : memref<1x32xf32, #tpu.memory_space<vmem>>, vector<1x32xf32>
    %5 = vector.broadcast %4 : vector<1x32xf32> to vector<8x32xf32>
    %6 = arith.addf %3, %5 : vector<8x32xf32>
    %cst_6 = arith.constant 0.353553385 : f32
    %7 = vector.broadcast %cst_6 : f32 to vector<8x32xf32>
    %8 = arith.mulf %6, %7 : vector<8x32xf32>
    %c0_7 = arith.constant 0 : index
    %c0_8 = arith.constant 0 : index
    %c0_9 = arith.constant 0 : index
    %9 = vector.load %arg9[%c0_7, %c0_8, %c0_9] : memref<1x8x32xf32, #tpu.memory_space<vmem>>, vector<1x8x32xf32>
    %10 = vector.shape_cast %9 : vector<1x8x32xf32> to vector<8x32xf32>
    %11 = vector.shape_cast %8 : vector<8x32xf32> to vector<1x8x32xf32>
    tpu.vector_store %arg9[%c0_7, %c0_8, %c0_9], %11 {strides = array<i32>} : memref<1x8x32xf32, #tpu.memory_space<vmem>>, vector<1x8x32xf32>,
    %c0_10 = arith.constant 0 : index
    %c0_11 = arith.constant 0 : index
    %12 = vector.load %arg5[%c0_10, %c0_11] : memref<32x32xf32, #tpu.memory_space<vmem>>, vector<32x32xf32>
    %cst_12 = arith.constant dense<0.000000e+00> : vector<8x32xf32>
    %13 = tpu.matmul %1, %12, %cst_12 {dimension_numbers = #tpu.dot_dimension_numbers<[1], [0], [0], [1], [0, 0, 1, 1], [], []>} : vector<8x32xf32>, vector<32x32xf32>, vector<8x32xf32> -> vector<8x32xf32>
    %c0_13 = arith.constant 0 : index
    %c0_14 = arith.constant 0 : index
    %14 = vector.load %arg6[%c0_13, %c0_14] : memref<1x32xf32, #tpu.memory_space<vmem>>, vector<1x32xf32>
    %15 = vector.broadcast %14 : vector<1x32xf32> to vector<8x32xf32>
    %16 = arith.addf %13, %15 : vector<8x32xf32>
    %c0_15 = arith.constant 0 : index
    %c0_16 = arith.constant 0 : index
    %c0_17 = arith.constant 0 : index
    %17 = vector.load %arg10[%c0_15, %c0_16, %c0_17] : memref<1x8x32xf32, #tpu.memory_space<vmem>>, vector<1x8x32xf32>
    %18 = vector.shape_cast %17 : vector<1x8x32xf32> to vector<8x32xf32>
    %19 = vector.shape_cast %16 : vector<8x32xf32> to vector<1x8x32xf32>
    tpu.vector_store %arg10[%c0_15, %c0_16, %c0_17], %19 {strides = array<i32>} : memref<1x8x32xf32, #tpu.memory_space<vmem>>, vector<1x8x32xf32>,
    %c0_18 = arith.constant 0 : index
    %c0_19 = arith.constant 0 : index
    %20 = vector.load %arg7[%c0_18, %c0_19] : memref<32x32xf32, #tpu.memory_space<vmem>>, vector<32x32xf32>
    %cst_20 = arith.constant dense<0.000000e+00> : vector<8x32xf32>
    %21 = tpu.matmul %1, %20, %cst_20 {dimension_numbers = #tpu.dot_dimension_numbers<[1], [0], [0], [1], [0, 0, 1, 1], [], []>} : vector<8x32xf32>, vector<32x32xf32>, vector<8x32xf32> -> vector<8x32xf32>
    %c0_21 = arith.constant 0 : index
    %c0_22 = arith.constant 0 : index
    %22 = vector.load %arg8[%c0_21, %c0_22] : memref<1x32xf32, #tpu.memory_space<vmem>>, vector<1x32xf32>
    %23 = vector.broadcast %22 : vector<1x32xf32> to vector<8x32xf32>
    %24 = arith.addf %21, %23 : vector<8x32xf32>
    %c0_23 = arith.constant 0 : index
    %c0_24 = arith.constant 0 : index
    %c0_25 = arith.constant 0 : index
    %25 = vector.load %arg11[%c0_23, %c0_24, %c0_25] : memref<1x8x32xf32, #tpu.memory_space<vmem>>, vector<1x8x32xf32>
    %26 = vector.shape_cast %25 : vector<1x8x32xf32> to vector<8x32xf32>
    %27 = vector.shape_cast %24 : vector<8x32xf32> to vector<1x8x32xf32>
    tpu.vector_store %arg11[%c0_23, %c0_24, %c0_25], %27 {strides = array<i32>} : memref<1x8x32xf32, #tpu.memory_space<vmem>>, vector<1x8x32xf32>,
    return
  }
  func.func @transform_0(%arg0: i32, %arg1: i32) -> (i32, i32, i32) {
    %c0_i32 = arith.constant 0 : i32
    %c0_i32_0 = arith.constant 0 : i32
    return %arg0, %arg1, %c0_i32 : i32, i32, i32
  }
  func.func @transform_1(%arg0: i32, %arg1: i32) -> (i32, i32) {
    %c0_i32 = arith.constant 0 : i32
    %c0_i32_0 = arith.constant 0 : i32
    %c0_i32_1 = arith.constant 0 : i32
    return %c0_i32, %c0_i32_0 : i32, i32
  }
  func.func @transform_2(%arg0: i32, %arg1: i32) -> (i32, i32) {
    %c0_i32 = arith.constant 0 : i32
    %c0_i32_0 = arith.constant 0 : i32
    %c0_i32_1 = arith.constant 0 : i32
    return %c0_i32, %c0_i32_0 : i32, i32
  }
  func.func @transform_3(%arg0: i32, %arg1: i32) -> (i32, i32) {
    %c0_i32 = arith.constant 0 : i32
    %c0_i32_0 = arith.constant 0 : i32
    %c0_i32_1 = arith.constant 0 : i32
    return %c0_i32, %c0_i32_0 : i32, i32
  }
  func.func @transform_4(%arg0: i32, %arg1: i32) -> (i32, i32) {
    %c0_i32 = arith.constant 0 : i32
    %c0_i32_0 = arith.constant 0 : i32
    %c0_i32_1 = arith.constant 0 : i32
    return %c0_i32, %c0_i32_0 : i32, i32
  }
  func.func @transform_5(%arg0: i32, %arg1: i32) -> (i32, i32) {
    %c0_i32 = arith.constant 0 : i32
    %c0_i32_0 = arith.constant 0 : i32
    %c0_i32_1 = arith.constant 0 : i32
    return %c0_i32, %c0_i32_0 : i32, i32
  }
  func.func @transform_6(%arg0: i32, %arg1: i32) -> (i32, i32) {
    %c0_i32 = arith.constant 0 : i32
    %c0_i32_0 = arith.constant 0 : i32
    %c0_i32_1 = arith.constant 0 : i32
    return %c0_i32, %c0_i32_0 : i32, i32
  }
  func.func @transform_7(%arg0: i32, %arg1: i32) -> (i32, i32, i32) {
    %c0_i32 = arith.constant 0 : i32
    %c0_i32_0 = arith.constant 0 : i32
    return %arg0, %arg1, %c0_i32 : i32, i32, i32
  }
  func.func @transform_8(%arg0: i32, %arg1: i32) -> (i32, i32, i32) {
    %c0_i32 = arith.constant 0 : i32
    %c0_i32_0 = arith.constant 0 : i32
    return %arg0, %arg1, %c0_i32 : i32, i32, i32
  }
  func.func @transform_9(%arg0: i32, %arg1: i32) -> (i32, i32, i32) {
    %c0_i32 = arith.constant 0 : i32
    %c0_i32_0 = arith.constant 0 : i32
    return %arg0, %arg1, %c0_i32 : i32, i32, i32
  }
}

</mosaic_0001>

<llo_original>
// kernel: tpu_custom_call.1
$region0: #{tpu_custom_call.1}
  #allocation0 [shape = 'u32[]', space=smem, size = 0x4, offset = 0x4, fixed_abs, tag = 'smem constant byte address 0x4 - core index']
  #allocation1 [shape = 'u32[72,128]{1,0:T(1,128)}', space=vmem, size = 0x9000, scoped, tag = 'internal scratch']
  %s0 = inlined_call_operand.hbm [shape: f32[2,8,32], index: 0, kind: input, shape index: {}]
  %s1 = inlined_call_operand.hbm [shape: f32[32,32], index: 1, kind: input, shape index: {}]
  %s2 = inlined_call_operand.vmem [shape: f32[1,32], index: 2, kind: input, shape index: {}]
  %s3 = inlined_call_operand.hbm [shape: f32[32,32], index: 3, kind: input, shape index: {}]
  %s4 = inlined_call_operand.vmem [shape: f32[1,32], index: 4, kind: input, shape index: {}]
  %s5 = inlined_call_operand.hbm [shape: f32[32,32], index: 5, kind: input, shape index: {}]
  %s6 = inlined_call_operand.vmem [shape: f32[1,32], index: 6, kind: input, shape index: {}]
  %s7 = inlined_call_operand.hbm [shape: f32[2,8,32], index: 7, kind: output, shape index: {0}]
  %s8 = inlined_call_operand.hbm [shape: f32[2,8,32], index: 8, kind: output, shape index: {1}]
  %s9 = inlined_call_operand.hbm [shape: f32[2,8,32], index: 9, kind: output, shape index: {2}]
  %10 = xla_tuple %s7, %s8, %s9
  %s11 = sld [smem:[#allocation0]]
  $region93: #{tpu_custom_call.1} parent=0
    _
  %s13 = ssub.s32 1, %s11
  %s14 = scalar_select 0, %s13, %s11
  $region1: #{tpu_custom_call.1} parent=0
    #allocation2 [shape = 'u8[8192]{0}', space=vmem, size = 0x2000, scoped, tag = 'input window, operand 0']
    #allocation3 [shape = 's32[2]{0}', space=sflag, size = 0x8, scoped, tag = 'scoped memory for tpu_custom_call.1']
    #allocation4 [shape = 's32[2]{0}', space=sflag, size = 0x8, scoped, tag = 'scoped memory for tpu_custom_call.1']
    #allocation5 [shape = 'u8[16384]{0}', space=vmem, size = 0x4000, scoped, tag = 'input window, operand 1, single buffered']
    #allocation6 [shape = 's32[1]{0}', space=sflag, size = 0x4, scoped, tag = 'scoped memory for tpu_custom_call.1']
    #allocation7 [shape = 'u8[16384]{0}', space=vmem, size = 0x4000, scoped, tag = 'input window, operand 3, single buffered']
    #allocation8 [shape = 'u8[16384]{0}', space=vmem, size = 0x4000, scoped, tag = 'input window, operand 5, single buffered']
    #allocation9 [shape = 's32[1]{0}', space=sflag, size = 0x4, scoped, tag = 'scoped memory for tpu_custom_call.1']
    #allocation10 [shape = 'u8[8192]{0}', space=vmem, size = 0x2000, scoped, tag = 'output window, operand 0']
    #allocation11 [shape = 'u8[8192]{0}', space=vmem, size = 0x2000, scoped, tag = 'output window, operand 1']
    #allocation12 [shape = 's32[2]{0}', space=sflag, size = 0x8, scoped, tag = 'scoped memory for tpu_custom_call.1']
    #allocation13 [shape = 'u8[8192]{0}', space=vmem, size = 0x2000, scoped, tag = 'output window, operand 2']
    %15 = vsyncpa [#allocation3], 0
    %s16 = scalar_lea.sflag [#allocation3], 1
    %17 = vsyncpa %s16, 0
    %18 = vsyncpa [#allocation6], 0
    %19 = vsyncpa [#allocation9], 0
    %20 = vsyncpa [#allocation4], 0
    %s21 = scalar_lea.sflag [#allocation4], 1
    %22 = vsyncpa %s21, 0
    %23 = vsyncpa [#allocation12], 0
    %s24 = scalar_lea.sflag [#allocation12], 1
    %25 = vsyncpa %s24, 0
    loop: start=0, step=1, limit=4
    $region2: #{tpu_custom_call.1} parent=1 // loop_pre_header
      _
    $region3: #{tpu_custom_call.1} parent=1 // loop_header
      %s27 = sphi 0, %s31
      %p28 = scmp.ge.s32.totalorder %s27, 4
      %s34 = sphi 0, %s46
      %s35 = sphi 0, %s42
      %s36 = sphi 0, %s34
      %s37 = sphi 0, %s35
      %s38 = sphi 0, %s36
      %s39 = sphi 0, %s37
      %s51 = sphi 0, %s53
      %s54 = sphi 0, %s51
      %s55 = sphi 0, %s54
      %s71 = sphi 0, %s55
      %s75 = sphi 0, %s75
      %s77 = sphi 0, %s75
      %s78 = sphi 0, %s77
      %s92 = sphi 0, %s78
      %s96 = sphi 0, %s96
      %s98 = sphi 0, %s96
      %s99 = sphi 0, %s98
      %s113 = sphi 0, %s99
      %s117 = sphi 0, %s117
      %s119 = sphi 0, %s117
      %s120 = sphi 0, %s119
      %s134 = sphi 0, %s120
      %s138 = sphi 0, %s138
      %s140 = sphi 0, %s138
      %s141 = sphi 0, %s140
      %s155 = sphi 0, %s141
      %s159 = sphi 0, %s159
      %s161 = sphi 0, %s159
      %s162 = sphi 0, %s161
      %s176 = sphi 0, %s162
      %s180 = sphi 0, %s180
      %s182 = sphi 0, %s180
      %s183 = sphi 0, %s182
      %s197 = sphi 0, %s183
      %s205 = sphi 0, %s207
      %s208 = sphi 0, %s205
      %s209 = sphi 0, %s208
      %s225 = sphi 0, %s209
      %s233 = sphi 0, %s235
      %s236 = sphi 0, %s233
      %s237 = sphi 0, %s236
      %s253 = sphi 0, %s237
      %s261 = sphi 0, %s263
      %s264 = sphi 0, %s261
      %s265 = sphi 0, %s264
      %s281 = sphi 0, %s265
    $region4: #{tpu_custom_call.1} parent=1 // loop_header_branch
      %30 = sbr.rel (%p28) target = $region8
    $region5: #{tpu_custom_call.1} parent=1 // loop_body
      %s32 = ssub.s32 %s27, 1
      %s33 = ssub.s32 %s27, 2
      %s40 = sadd.s32 1, %s35
      %p41 = scmp.ge.s32.totalorder %s40, 1
      %s42 = scalar_select %p41, 0, %s40
      %s43 = sadd.s32 1, %s34
      %s44 = scalar_select %p41, %s43, %s34
      %p45 = scmp.ge.s32.totalorder %s44, 2
      %s46 = scalar_select %p45, 0, %s44
      %s47 = ssub.s32 %s34, %s46
      %s48 = ssub.s32 %s35, %s42
      %s49 = sor.u32 %s47, %s48
      %p50 = scmp.eq.s32.totalorder %s49, 0
      %s52 = sadd.s32 %s51, 1
      %s53 = scalar_select %p50, %s51, %s52
      %p56 = pneg %p50
      %p57 = scmp.eq.s32.totalorder %s27, 1
      %p58 = por %p56, %p57
      %p59 = scmp.ne.s32.totalorder %s51, %s54
      %p60 = scmp.eq.s32.totalorder %s27, 0
      %p61 = por %p59, %p60
      %p62 = scmp.ne.s32.totalorder %s51, %s54
      %p63 = scmp.eq.s32.totalorder %s32, 1
      %p64 = por %p62, %p63
      %p65 = scmp.ne.s32.totalorder %s54, %s55
      %p66 = scmp.eq.s32.totalorder %s32, 0
      %p67 = por %p65, %p66
      %p68 = scmp.ne.s32.totalorder %s54, %s55
      %p69 = scmp.eq.s32.totalorder %s33, 1
      %p70 = por %p68, %p69
      %p72 = scmp.ne.s32.totalorder %s55, %s71
      %p73 = scmp.eq.s32.totalorder %s33, 0
      %p74 = por %p72, %p73
      %s76 = sadd.s32 %s75, 1
      %p79 = scmp.eq.s32.totalorder %s27, 1
      %p80 = scmp.ne.s32.totalorder %s75, %s77
      %p81 = scmp.eq.s32.totalorder %s27, 0
      %p82 = por %p80, %p81
      %p83 = scmp.ne.s32.totalorder %s75, %s77
      %p84 = scmp.eq.s32.totalorder %s32, 1
      %p85 = por %p83, %p84
      %p86 = scmp.ne.s32.totalorder %s77, %s78
      %p87 = scmp.eq.s32.totalorder %s32, 0
      %p88 = por %p86, %p87
      %p89 = scmp.ne.s32.totalorder %s77, %s78
      %p90 = scmp.eq.s32.totalorder %s33, 1
      %p91 = por %p89, %p90
      %p93 = scmp.ne.s32.totalorder %s78, %s92
      %p94 = scmp.eq.s32.totalorder %s33, 0
      %p95 = por %p93, %p94
      %s97 = sadd.s32 %s96, 1
      %p100 = scmp.eq.s32.totalorder %s27, 1
      %p101 = scmp.ne.s32.totalorder %s96, %s98
      %p102 = scmp.eq.s32.totalorder %s27, 0
      %p103 = por %p101, %p102
      %p104 = scmp.ne.s32.totalorder %s96, %s98
      %p105 = scmp.eq.s32.totalorder %s32, 1
      %p106 = por %p104, %p105
      %p107 = scmp.ne.s32.totalorder %s98, %s99
      %p108 = scmp.eq.s32.totalorder %s32, 0
      %p109 = por %p107, %p108
      %p110 = scmp.ne.s32.totalorder %s98, %s99
      %p111 = scmp.eq.s32.totalorder %s33, 1
      %p112 = por %p110, %p111
      %p114 = scmp.ne.s32.totalorder %s99, %s113
      %p115 = scmp.eq.s32.totalorder %s33, 0
      %p116 = por %p114, %p115
      %s118 = sadd.s32 %s117, 1
      %p121 = scmp.eq.s32.totalorder %s27, 1
      %p122 = scmp.ne.s32.totalorder %s117, %s119
      %p123 = scmp.eq.s32.totalorder %s27, 0
      %p124 = por %p122, %p123
      %p125 = scmp.ne.s32.totalorder %s117, %s119
      %p126 = scmp.eq.s32.totalorder %s32, 1
      %p127 = por %p125, %p126
      %p128 = scmp.ne.s32.totalorder %s119, %s120
      %p129 = scmp.eq.s32.totalorder %s32, 0
      %p130 = por %p128, %p129
      %p131 = scmp.ne.s32.totalorder %s119, %s120
      %p132 = scmp.eq.s32.totalorder %s33, 1
      %p133 = por %p131, %p132
      %p135 = scmp.ne.s32.totalorder %s120, %s134
      %p136 = scmp.eq.s32.totalorder %s33, 0
      %p137 = por %p135, %p136
      %s139 = sadd.s32 %s138, 1
      %p142 = scmp.eq.s32.totalorder %s27, 1
      %p143 = scmp.ne.s32.totalorder %s138, %s140
      %p144 = scmp.eq.s32.totalorder %s27, 0
      %p145 = por %p143, %p144
      %p146 = scmp.ne.s32.totalorder %s138, %s140
      %p147 = scmp.eq.s32.totalorder %s32, 1
      %p148 = por %p146, %p147
      %p149 = scmp.ne.s32.totalorder %s140, %s141
      %p150 = scmp.eq.s32.totalorder %s32, 0
      %p151 = por %p149, %p150
      %p152 = scmp.ne.s32.totalorder %s140, %s141
      %p153 = scmp.eq.s32.totalorder %s33, 1
      %p154 = por %p152, %p153
      %p156 = scmp.ne.s32.totalorder %s141, %s155
      %p157 = scmp.eq.s32.totalorder %s33, 0
      %p158 = por %p156, %p157
      %s160 = sadd.s32 %s159, 1
      %p163 = scmp.eq.s32.totalorder %s27, 1
      %p164 = scmp.ne.s32.totalorder %s159, %s161
      %p165 = scmp.eq.s32.totalorder %s27, 0
      %p166 = por %p164, %p165
      %p167 = scmp.ne.s32.totalorder %s159, %s161
      %p168 = scmp.eq.s32.totalorder %s32, 1
      %p169 = por %p167, %p168
      %p170 = scmp.ne.s32.totalorder %s161, %s162
      %p171 = scmp.eq.s32.totalorder %s32, 0
      %p172 = por %p170, %p171
      %p173 = scmp.ne.s32.totalorder %s161, %s162
      %p174 = scmp.eq.s32.totalorder %s33, 1
      %p175 = por %p173, %p174
      %p177 = scmp.ne.s32.totalorder %s162, %s176
      %p178 = scmp.eq.s32.totalorder %s33, 0
      %p179 = por %p177, %p178
      %s181 = sadd.s32 %s180, 1
      %p184 = scmp.eq.s32.totalorder %s27, 1
      %p185 = scmp.ne.s32.totalorder %s180, %s182
      %p186 = scmp.eq.s32.totalorder %s27, 0
      %p187 = por %p185, %p186
      %p188 = scmp.ne.s32.totalorder %s180, %s182
      %p189 = scmp.eq.s32.totalorder %s32, 1
      %p190 = por %p188, %p189
      %p191 = scmp.ne.s32.totalorder %s182, %s183
      %p192 = scmp.eq.s32.totalorder %s32, 0
      %p193 = por %p191, %p192
      %p194 = scmp.ne.s32.totalorder %s182, %s183
      %p195 = scmp.eq.s32.totalorder %s33, 1
      %p196 = por %p194, %p195
      %p198 = scmp.ne.s32.totalorder %s183, %s197
      %p199 = scmp.eq.s32.totalorder %s33, 0
      %p200 = por %p198, %p199
      %s201 = ssub.s32 %s34, %s46
      %s202 = ssub.s32 %s35, %s42
      %s203 = sor.u32 %s201, %s202
      %p204 = scmp.eq.s32.totalorder %s203, 0
      %s206 = sadd.s32 %s205, 1
      %s207 = scalar_select %p204, %s205, %s206
      %p210 = pneg %p204
      %p211 = scmp.eq.s32.totalorder %s27, 1
      %p212 = por %p210, %p211
      %p213 = scmp.ne.s32.totalorder %s205, %s208
      %p214 = scmp.eq.s32.totalorder %s27, 0
      %p215 = por %p213, %p214
      %p216 = scmp.ne.s32.totalorder %s205, %s208
      %p217 = scmp.eq.s32.totalorder %s32, 1
      %p218 = por %p216, %p217
      %p219 = scmp.ne.s32.totalorder %s208, %s209
      %p220 = scmp.eq.s32.totalorder %s32, 0
      %p221 = por %p219, %p220
      %p222 = scmp.ne.s32.totalorder %s208, %s209
      %p223 = scmp.eq.s32.totalorder %s33, 1
      %p224 = por %p222, %p223
      %p226 = scmp.ne.s32.totalorder %s209, %s225
      %p227 = scmp.eq.s32.totalorder %s33, 0
      %p228 = por %p226, %p227
      %s229 = ssub.s32 %s34, %s46
      %s230 = ssub.s32 %s35, %s42
      %s231 = sor.u32 %s229, %s230
      %p232 = scmp.eq.s32.totalorder %s231, 0
      %s234 = sadd.s32 %s233, 1
      %s235 = scalar_select %p232, %s233, %s234
      %p238 = pneg %p232
      %p239 = scmp.eq.s32.totalorder %s27, 1
      %p240 = por %p238, %p239
      %p241 = scmp.ne.s32.totalorder %s233, %s236
      %p242 = scmp.eq.s32.totalorder %s27, 0
      %p243 = por %p241, %p242
      %p244 = scmp.ne.s32.totalorder %s233, %s236
      %p245 = scmp.eq.s32.totalorder %s32, 1
      %p246 = por %p244, %p245
      %p247 = scmp.ne.s32.totalorder %s236, %s237
      %p248 = scmp.eq.s32.totalorder %s32, 0
      %p249 = por %p247, %p248
      %p250 = scmp.ne.s32.totalorder %s236, %s237
      %p251 = scmp.eq.s32.totalorder %s33, 1
      %p252 = por %p250, %p251
      %p254 = scmp.ne.s32.totalorder %s237, %s253
      %p255 = scmp.eq.s32.totalorder %s33, 0
      %p256 = por %p254, %p255
      %s257 = ssub.s32 %s34, %s46
      %s258 = ssub.s32 %s35, %s42
      %s259 = sor.u32 %s257, %s258
      %p260 = scmp.eq.s32.totalorder %s259, 0
      %s262 = sadd.s32 %s261, 1
      %s263 = scalar_select %p260, %s261, %s262
      %p266 = pneg %p260
      %p267 = scmp.eq.s32.totalorder %s27, 1
      %p268 = por %p266, %p267
      %p269 = scmp.ne.s32.totalorder %s261, %s264
      %p270 = scmp.eq.s32.totalorder %s27, 0
      %p271 = por %p269, %p270
      %p272 = scmp.ne.s32.totalorder %s261, %s264
      %p273 = scmp.eq.s32.totalorder %s32, 1
      %p274 = por %p272, %p273
      %p275 = scmp.ne.s32.totalorder %s264, %s265
      %p276 = scmp.eq.s32.totalorder %s32, 0
      %p277 = por %p275, %p276
      %p278 = scmp.ne.s32.totalorder %s264, %s265
      %p279 = scmp.eq.s32.totalorder %s33, 1
      %p280 = por %p278, %p279
      %p282 = scmp.ne.s32.totalorder %s265, %s281
      %p283 = scmp.eq.s32.totalorder %s33, 0
      %p284 = por %p282, %p283
      %p285 = scmp.le.s32.totalorder 1, %s27
      %p286 = scmp.lt.s32.totalorder %s27, 3
      %p287 = pnand %p285, %p286
      %p288 = pneg %p287
      // Predicated region
      $region9: #{tpu_custom_call.1} parent=5 // pred_check
        _
      $region10: #{tpu_custom_call.1} parent=5 // pred_check_branch
        %290 = sbr.rel (%p287) target = $region12
      $region11: #{tpu_custom_call.1} parent=5 // pred_region
        %s291 = ssub.s32 %s27, 1
        // Predicated region
        $region13: #{tpu_custom_call.1} parent=11 // pred_check
          %p292 = pneg %p88
        $region14: #{tpu_custom_call.1} parent=11 // pred_check_branch
          %294 = sbr.rel (%p292) target = $region16
        $region15: #{tpu_custom_call.1} parent=11 // pred_region
          %296 = vsyncadd [#allocation6], 0
          %s297 = sshll.u32 %s1, 4
          %s298 = int_to_ptr.hbm [resolvable:$true] %s297
          %s299 = sshll.u32 [#allocation5], 4
          %s300 = int_to_ptr.vmem [resolvable:$true] %s299
          %305 = dma.hbm_to_vmem [thread:$0]  %s298, 512, %s300, [#allocation6], 128, 128, 8
        $region16: #{tpu_custom_call.1} parent=11 // pred_fallthru
          _
        // Predicated region
        $region17: #{tpu_custom_call.1} parent=11 // pred_check
          %p306 = pneg %p109
        $region18: #{tpu_custom_call.1} parent=11 // pred_check_branch
          %308 = sbr.rel (%p306) target = $region20
        $region19: #{tpu_custom_call.1} parent=11 // pred_region
          _
        $region20: #{tpu_custom_call.1} parent=11 // pred_fallthru
          _
        // Predicated region
        $region21: #{tpu_custom_call.1} parent=11 // pred_check
          %p309 = pneg %p130
        $region22: #{tpu_custom_call.1} parent=11 // pred_check_branch
          %311 = sbr.rel (%p309) target = $region24
        $region23: #{tpu_custom_call.1} parent=11 // pred_region
          %313 = vsyncadd [#allocation6], 0
          %s314 = sshll.u32 %s3, 4
          %s315 = int_to_ptr.hbm [resolvable:$true] %s314
          %s316 = sshll.u32 [#allocation7], 4
          %s317 = int_to_ptr.vmem [resolvable:$true] %s316
          %322 = dma.hbm_to_vmem [thread:$0]  %s315, 512, %s317, [#allocation6], 128, 128, 8
        $region24: #{tpu_custom_call.1} parent=11 // pred_fallthru
          _
        // Predicated region
        $region25: #{tpu_custom_call.1} parent=11 // pred_check
          %p323 = pneg %p151
        $region26: #{tpu_custom_call.1} parent=11 // pred_check_branch
          %325 = sbr.rel (%p323) target = $region28
        $region27: #{tpu_custom_call.1} parent=11 // pred_region
          _
        $region28: #{tpu_custom_call.1} parent=11 // pred_fallthru
          _
        // Predicated region
        $region29: #{tpu_custom_call.1} parent=11 // pred_check
          %p326 = pneg %p172
        $region30: #{tpu_custom_call.1} parent=11 // pred_check_branch
          %328 = sbr.rel (%p326) target = $region32
        $region31: #{tpu_custom_call.1} parent=11 // pred_region
          %330 = vsyncadd [#allocation9], 0
          %s331 = sshll.u32 %s5, 4
          %s332 = int_to_ptr.hbm [resolvable:$true] %s331
          %s333 = sshll.u32 [#allocation8], 4
          %s334 = int_to_ptr.vmem [resolvable:$true] %s333
          %339 = dma.hbm_to_vmem [thread:$0]  %s332, 512, %s334, [#allocation9], 128, 128, 8
        $region32: #{tpu_custom_call.1} parent=11 // pred_fallthru
          _
        // Predicated region
        $region33: #{tpu_custom_call.1} parent=11 // pred_check
          %p340 = pneg %p193
        $region34: #{tpu_custom_call.1} parent=11 // pred_check_branch
          %342 = sbr.rel (%p340) target = $region36
        $region35: #{tpu_custom_call.1} parent=11 // pred_region
          _
        $region36: #{tpu_custom_call.1} parent=11 // pred_fallthru
          _
      $region12: #{tpu_custom_call.1} parent=5 // pred_fallthru
        _
      %p343 = scmp.lt.s32.totalorder %s27, 2
      // Predicated region
      $region37: #{tpu_custom_call.1} parent=5 // pred_check
        %p344 = pneg %p343
      $region38: #{tpu_custom_call.1} parent=5 // pred_check_branch
        %346 = sbr.rel (%p344) target = $region40
      $region39: #{tpu_custom_call.1} parent=5 // pred_region
        // Predicated region
        $region41: #{tpu_custom_call.1} parent=39 // pred_check
          %p347 = pneg %p61
        $region42: #{tpu_custom_call.1} parent=39 // pred_check_branch
          %349 = sbr.rel (%p347) target = $region44
        $region43: #{tpu_custom_call.1} parent=39 // pred_region
          %s350 = sand.u32 %s51, 1
          %s351 = scalar_lea.sflag [#allocation3], %s350
          %s352 = sand.u32 %s51, 1
          %s353 = smul.addr %s352, 8
          %s354 = scalar_lea.vmem [#allocation2], %s353
          %356 = vsyncadd %s351, 0
          %s357 = sadd.s32 %s35, %s34
          %s358 = smul.addr %s357, 8
          %s359 = scalar_lea.hbm %s0, %s358
          %s361 = sshll.u32 %s359, 4
          %s362 = int_to_ptr.hbm [resolvable:$true] %s361
          %s363 = sshll.u32 %s354, 4
          %s364 = int_to_ptr.vmem [resolvable:$true] %s363
          %366 = dma.hbm_to_vmem [thread:$0]  %s362, 128, %s364, %s351
        $region44: #{tpu_custom_call.1} parent=39 // pred_fallthru
          _
      $region40: #{tpu_custom_call.1} parent=5 // pred_fallthru
        _
      %p367 = scmp.le.s32.totalorder 1, %s27
      %p368 = scmp.lt.s32.totalorder %s27, 3
      %p369 = pnand %p367, %p368
      %p370 = pneg %p369
      // Predicated region
      $region45: #{tpu_custom_call.1} parent=5 // pred_check
        _
      $region46: #{tpu_custom_call.1} parent=5 // pred_check_branch
        %372 = sbr.rel (%p369) target = $region48
      $region47: #{tpu_custom_call.1} parent=5 // pred_region
        %s373 = ssub.s32 %s27, 1
        %s374 = sand.u32 %s54, 1
        %s375 = scalar_lea.sflag [#allocation3], %s374
        %s376 = sand.u32 %s54, 1
        %s377 = smul.addr %s376, 8
        %s378 = scalar_lea.vmem [#allocation2], %s377
        // Predicated region
        $region49: #{tpu_custom_call.1} parent=47 // pred_check
          %p379 = pneg %p67
        $region50: #{tpu_custom_call.1} parent=47 // pred_check_branch
          %381 = sbr.rel (%p379) target = $region52
        $region51: #{tpu_custom_call.1} parent=47 // pred_region
          %383 = dma.done %s375, 128
        $region52: #{tpu_custom_call.1} parent=47 // pred_fallthru
          _
        // Predicated region
        $region53: #{tpu_custom_call.1} parent=47 // pred_check
          %p384 = pneg %p88
        $region54: #{tpu_custom_call.1} parent=47 // pred_check_branch
          %386 = sbr.rel (%p384) target = $region56
        $region55: #{tpu_custom_call.1} parent=47 // pred_region
          %388 = dma.done [#allocation6], 512
        $region56: #{tpu_custom_call.1} parent=47 // pred_fallthru
          _
        // Predicated region
        $region57: #{tpu_custom_call.1} parent=47 // pred_check
          %p389 = pneg %p130
        $region58: #{tpu_custom_call.1} parent=47 // pred_check_branch
          %391 = sbr.rel (%p389) target = $region60
        $region59: #{tpu_custom_call.1} parent=47 // pred_region
          %393 = dma.done [#allocation6], 512
        $region60: #{tpu_custom_call.1} parent=47 // pred_fallthru
          _
        // Predicated region
        $region61: #{tpu_custom_call.1} parent=47 // pred_check
          %p394 = pneg %p172
        $region62: #{tpu_custom_call.1} parent=47 // pred_check_branch
          %396 = sbr.rel (%p394) target = $region64
        $region63: #{tpu_custom_call.1} parent=47 // pred_region
          %398 = dma.done [#allocation9], 512
        $region64: #{tpu_custom_call.1} parent=47 // pred_fallthru
          _
        %s399 = sand.u32 %s54, 1
        %s400 = scalar_lea.sflag [#allocation3], %s399
        %s401 = sand.u32 %s54, 1
        %s402 = smul.addr %s401, 8
        %s403 = scalar_lea.vmem [#allocation2], %s402
        %p404 = pneg %p67
        %p405 = pneg %p64
        %p406 = pneg %p88
        %p407 = pneg %p85
        %p408 = pneg %p109
        %p409 = pneg %p106
        %p410 = pneg %p130
        %p411 = pneg %p127
        %p412 = pneg %p151
        %p413 = pneg %p148
        %p414 = pneg %p172
        %p415 = pneg %p169
        %p416 = pneg %p193
        %p417 = pneg %p190
        %p418 = pneg %p221
        %p419 = pneg %p218
        %s420 = sand.u32 %s208, 1
        %s421 = scalar_lea.sflag [#allocation4], %s420
        %s422 = sand.u32 %s208, 1
        %s423 = smul.addr %s422, 8
        %s424 = scalar_lea.vmem [#allocation10], %s423
        %p425 = pneg %p249
        %p426 = pneg %p246
        %s427 = sand.u32 %s32, 1
        %s428 = scalar_lea.sflag [#allocation12], %s427
        %s429 = sand.u32 %s236, 1
        %s430 = smul.addr %s429, 8
        %s431 = scalar_lea.vmem [#allocation11], %s430
        %p432 = pneg %p277
        %p433 = pneg %p274
        %s434 = sand.u32 %s32, 1
        %s435 = scalar_lea.sflag [#allocation12], %s434
        %s436 = sand.u32 %s264, 1
        %s437 = smul.addr %s436, 8
        %s438 = scalar_lea.vmem [#allocation13], %s437
        %v439 = vld [vmem:[%s378] sm:$0xff]
        %v440 = vld [vmem:[#allocation5] sm:$0xff]
        %v441 = vld [vmem:[#allocation5 + $0x8] sm:$0xff]
        %v442 = vld [vmem:[#allocation5 + $0x10] sm:$0xff]
        %v443 = vld [vmem:[#allocation5 + $0x18] sm:$0xff]
        %v444 = vld [vmem:[%s2] sm:$0x1]
        %v446 = vperm.slane %v444, 0
        %vm448 = vcmask 261120
        %v450 = vsel %vm448, %v439, 0
        %452 = vmatpush.msra.mxu0 0.0
        %453 = vmatpush.msra.mxu0 0.0
        %454 = vmatpush.msra.mxu0 0.0
        %455 = vmatpush.msra.mxu0 0.0
        %456 = vmatpush.msra.mxu0 0.0
        %457 = vmatpush.msra.mxu0 0.0
        %458 = vmatpush.msra.mxu0 0.0
        %459 = vmatpush.msra.mxu0 0.0
        %460 = vmatpush.msra.mxu0 0.0
        %461 = vmatpush.msra.mxu0 0.0
        %462 = vmatpush.msra.mxu0 0.0
        %463 = vmatpush.msra.mxu0 0.0
        %464 = vmatpush.msra.mxu0 %v443
        %465 = vmatpush.msra.mxu0 %v442
        %466 = vmatpush.msra.mxu0 %v441
        %467 = vmatpush.msra.mxu0 %v440
        %468 = vmatmul.f32.gmra.mxu0 %v450
        %v469 = vpop.f32.mrf.mxu0
        %v470 = vadd.f32 %v446, %v469
        %471 = vdwg.mxu0
        %v472 = vmul.f32 %v470, 0.35355338
        %473 = vst.msk [vmem:[%s424] sm:$0xff] %vm448, %v472
        %v474 = vld [vmem:[#allocation7] sm:$0xff]
        %v475 = vld [vmem:[#allocation7 + $0x8] sm:$0xff]
        %v476 = vld [vmem:[#allocation7 + $0x10] sm:$0xff]
        %v477 = vld [vmem:[#allocation7 + $0x18] sm:$0xff]
        %v478 = vld [vmem:[%s4] sm:$0x1]
        %v480 = vperm.slane %v478, 0
        %482 = vmatpush.msra.mxu0 0.0
        %483 = vmatpush.msra.mxu0 0.0
        %484 = vmatpush.msra.mxu0 0.0
        %485 = vmatpush.msra.mxu0 0.0
        %486 = vmatpush.msra.mxu0 0.0
        %487 = vmatpush.msra.mxu0 0.0
        %488 = vmatpush.msra.mxu0 0.0
        %489 = vmatpush.msra.mxu0 0.0
        %490 = vmatpush.msra.mxu0 0.0
        %491 = vmatpush.msra.mxu0 0.0
        %492 = vmatpush.msra.mxu0 0.0
        %493 = vmatpush.msra.mxu0 0.0
        %494 = vmatpush.msra.mxu0 %v477
        %495 = vmatpush.msra.mxu0 %v476
        %496 = vmatpush.msra.mxu0 %v475
        %497 = vmatpush.msra.mxu0 %v474
        %498 = vmatmul.f32.gmra.mxu0 %v450
        %v499 = vpop.f32.mrf.mxu0
        %v500 = vadd.f32 %v480, %v499
        %501 = vdwg.mxu0
        %502 = vst.msk [vmem:[%s431] sm:$0xff] %vm448, %v500
        %v503 = vld [vmem:[#allocation8] sm:$0xff]
        %v504 = vld [vmem:[#allocation8 + $0x8] sm:$0xff]
        %v505 = vld [vmem:[#allocation8 + $0x10] sm:$0xff]
        %v506 = vld [vmem:[#allocation8 + $0x18] sm:$0xff]
        %v507 = vld [vmem:[%s6] sm:$0x1]
        %v509 = vperm.slane %v507, 0
        %511 = vmatpush.msra.mxu0 0.0
        %512 = vmatpush.msra.mxu0 0.0
        %513 = vmatpush.msra.mxu0 0.0
        %514 = vmatpush.msra.mxu0 0.0
        %515 = vmatpush.msra.mxu0 0.0
        %516 = vmatpush.msra.mxu0 0.0
        %517 = vmatpush.msra.mxu0 0.0
        %518 = vmatpush.msra.mxu0 0.0
        %519 = vmatpush.msra.mxu0 0.0
        %520 = vmatpush.msra.mxu0 0.0
        %521 = vmatpush.msra.mxu0 0.0
        %522 = vmatpush.msra.mxu0 0.0
        %523 = vmatpush.msra.mxu0 %v506
        %524 = vmatpush.msra.mxu0 %v505
        %525 = vmatpush.msra.mxu0 %v504
        %526 = vmatpush.msra.mxu0 %v503
        %527 = vmatmul.f32.gmra.mxu0 %v450
        %v528 = vpop.f32.mrf.mxu0
        %v529 = vadd.f32 %v509, %v528
        %530 = vdwg.mxu0
        %531 = vst.msk [vmem:[%s438] sm:$0xff] %vm448, %v529
        %s532 = sand.u32 %s208, 1
        %s533 = scalar_lea.sflag [#allocation4], %s532
        %s534 = sand.u32 %s208, 1
        %s535 = smul.addr %s534, 8
        %s536 = scalar_lea.vmem [#allocation10], %s535
        %s537 = sand.u32 %s32, 1
        %s538 = scalar_lea.sflag [#allocation12], %s537
        %s539 = sand.u32 %s236, 1
        %s540 = smul.addr %s539, 8
        %s541 = scalar_lea.vmem [#allocation11], %s540
        %s542 = sand.u32 %s32, 1
        %s543 = scalar_lea.sflag [#allocation12], %s542
        %s544 = sand.u32 %s264, 1
        %s545 = smul.addr %s544, 8
        %s546 = scalar_lea.vmem [#allocation13], %s545
        // Predicated region
        $region65: #{tpu_custom_call.1} parent=47 // pred_check
          %p547 = pneg %p218
        $region66: #{tpu_custom_call.1} parent=47 // pred_check_branch
          %549 = sbr.rel (%p547) target = $region68
        $region67: #{tpu_custom_call.1} parent=47 // pred_region
          %551 = vsyncadd %s533, 0
          %s552 = sadd.s32 %s37, %s36
          %s553 = smul.addr %s552, 8
          %s554 = scalar_lea.hbm %s7, %s553
          %s556 = sshll.u32 %s536, 4
          %s557 = int_to_ptr.vmem [resolvable:$true] %s556
          %s558 = sshll.u32 %s554, 4
          %s559 = int_to_ptr.hbm [resolvable:$true] %s558
          %561 = dma.vmem_to_hbm [thread:$0]  %s557, 128, %s559, %s533
        $region68: #{tpu_custom_call.1} parent=47 // pred_fallthru
          _
        // Predicated region
        $region69: #{tpu_custom_call.1} parent=47 // pred_check
          %p562 = pneg %p246
        $region70: #{tpu_custom_call.1} parent=47 // pred_check_branch
          %564 = sbr.rel (%p562) target = $region72
        $region71: #{tpu_custom_call.1} parent=47 // pred_region
          %566 = vsyncadd %s538, 0
          %s567 = sadd.s32 %s37, %s36
          %s568 = smul.addr %s567, 8
          %s569 = scalar_lea.hbm %s8, %s568
          %s571 = sshll.u32 %s541, 4
          %s572 = int_to_ptr.vmem [resolvable:$true] %s571
          %s573 = sshll.u32 %s569, 4
          %s574 = int_to_ptr.hbm [resolvable:$true] %s573
          %576 = dma.vmem_to_hbm [thread:$0]  %s572, 128, %s574, %s538
        $region72: #{tpu_custom_call.1} parent=47 // pred_fallthru
          _
        // Predicated region
        $region73: #{tpu_custom_call.1} parent=47 // pred_check
          %p577 = pneg %p274
        $region74: #{tpu_custom_call.1} parent=47 // pred_check_branch
          %579 = sbr.rel (%p577) target = $region76
        $region75: #{tpu_custom_call.1} parent=47 // pred_region
          %581 = vsyncadd %s543, 0
          %s582 = sadd.s32 %s37, %s36
          %s583 = smul.addr %s582, 8
          %s584 = scalar_lea.hbm %s9, %s583
          %s586 = sshll.u32 %s546, 4
          %s587 = int_to_ptr.vmem [resolvable:$true] %s586
          %s588 = sshll.u32 %s584, 4
          %s589 = int_to_ptr.hbm [resolvable:$true] %s588
          %591 = dma.vmem_to_hbm [thread:$0]  %s587, 128, %s589, %s543
        $region76: #{tpu_custom_call.1} parent=47 // pred_fallthru
          _
      $region48: #{tpu_custom_call.1} parent=5 // pred_fallthru
        _
      %p592 = scmp.le.s32.totalorder 2, %s27
      // Predicated region
      $region77: #{tpu_custom_call.1} parent=5 // pred_check
        %p593 = pneg %p592
      $region78: #{tpu_custom_call.1} parent=5 // pred_check_branch
        %595 = sbr.rel (%p593) target = $region80
      $region79: #{tpu_custom_call.1} parent=5 // pred_region
        %s596 = ssub.s32 %s27, 2
        // Predicated region
        $region81: #{tpu_custom_call.1} parent=79 // pred_check
          %p597 = pneg %p224
        $region82: #{tpu_custom_call.1} parent=79 // pred_check_branch
          %599 = sbr.rel (%p597) target = $region84
        $region83: #{tpu_custom_call.1} parent=79 // pred_region
          %s600 = sand.u32 %s209, 1
          %s601 = scalar_lea.sflag [#allocation4], %s600
          %s602 = sand.u32 %s209, 1
          %s603 = smul.addr %s602, 8
          %s604 = scalar_lea.vmem [#allocation10], %s603
          %606 = dma.done %s601, 128
        $region84: #{tpu_custom_call.1} parent=79 // pred_fallthru
          _
        // Predicated region
        $region85: #{tpu_custom_call.1} parent=79 // pred_check
          %p607 = pneg %p252
        $region86: #{tpu_custom_call.1} parent=79 // pred_check_branch
          %609 = sbr.rel (%p607) target = $region88
        $region87: #{tpu_custom_call.1} parent=79 // pred_region
          %s610 = sand.u32 %s33, 1
          %s611 = scalar_lea.sflag [#allocation12], %s610
          %s612 = sand.u32 %s237, 1
          %s613 = smul.addr %s612, 8
          %s614 = scalar_lea.vmem [#allocation11], %s613
          %616 = dma.done %s611, 128
        $region88: #{tpu_custom_call.1} parent=79 // pred_fallthru
          _
        // Predicated region
        $region89: #{tpu_custom_call.1} parent=79 // pred_check
          %p617 = pneg %p280
        $region90: #{tpu_custom_call.1} parent=79 // pred_check_branch
          %619 = sbr.rel (%p617) target = $region92
        $region91: #{tpu_custom_call.1} parent=79 // pred_region
          %s620 = sand.u32 %s33, 1
          %s621 = scalar_lea.sflag [#allocation12], %s620
          %s622 = sand.u32 %s265, 1
          %s623 = smul.addr %s622, 8
          %s624 = scalar_lea.vmem [#allocation13], %s623
          %626 = dma.done %s621, 128
        $region92: #{tpu_custom_call.1} parent=79 // pred_fallthru
          _
      $region80: #{tpu_custom_call.1} parent=5 // pred_fallthru
        _
    $region6: #{tpu_custom_call.1} parent=1 // loop_footer
      %s31 = sadd.s32 1, %s27
    $region7: #{tpu_custom_call.1} parent=1 // loop_footer_branch
      %26 = sbr.rel target = $region3
    $region8: #{tpu_custom_call.1} parent=1 // loop_exit
      _
    %627 = vsyncpa [#allocation3], 1
    %s628 = scalar_lea.sflag [#allocation3], 1
    %629 = vsyncpa %s628, 1
    %630 = vsyncpa [#allocation6], 1
    %631 = vsyncpa [#allocation9], 1
    %632 = vsyncpa [#allocation4], 1
    %s633 = scalar_lea.sflag [#allocation4], 1
    %634 = vsyncpa %s633, 1
    %635 = vsyncpa [#allocation12], 1
    %s636 = scalar_lea.sflag [#allocation12], 1
    %637 = vsyncpa %s636, 1

</llo_original>
